<compile_context>
chip_gen: v7x
topology: tpu7x:2x2x1
jax: 0.10.0
libtpu: 0.0.40
codegen_flags: <defaults>
</compile_context>

<pallas_src>
import functools

import jax
import jax.numpy as jnp
from jax.experimental import pallas as pl
from jax.experimental.pallas import tpu as pltpu


def _metric_sum_union_kernel(pred_ref, gt_ref, ones_ref, out_ref, *,
                             hw, hw_tile, chunk, tiles_per_group,
                             needs_mask, exact_argmax):
    # pred_ref: (1, C, hw_tile)   native float dtype
    # gt_ref:   (1, 1, hw_tile)   int32
    # ones_ref: (chunk, 128)      bf16, resident (constant index_map)
    # out_ref:  (1, 1, C, 128)    f32, resident across the tile (arbitrary) axis
    t = pl.program_id(2)
    C = pred_ref.shape[1]
    n_chunks = hw_tile // chunk

    @pl.when(t == 0)
    def _init():
        out_ref[...] = jnp.zeros_like(out_ref)

    ones_rhs = ones_ref[...]                                     # (chunk, 128)
    if needs_mask:
        tile_off = (pl.program_id(1) * tiles_per_group + t) * hw_tile

    def body(j, acc):
        start = pl.multiple_of(j * chunk, chunk)                 # 128-aligned
        pred_c = pred_ref[0, :, pl.ds(start, chunk)]             # (C, chunk)
        gt_c = gt_ref[0, :, pl.ds(start, chunk)]                 # (1, chunk)
        idx = jax.lax.broadcasted_iota(jnp.int32, (C, chunk), 0)
        m = jnp.max(pred_c, axis=0, keepdims=True)               # (1, chunk)

        if needs_mask:
            lane = jax.lax.broadcasted_iota(jnp.int32, (1, chunk), 1)
            valid = lane < (hw - tile_off - start)               # (1, chunk)
            gt_c = jnp.where(valid, gt_c, C)
        if exact_argmax:
            # first-max tie-break, identical to torch.argmax
            arg = jnp.min(jnp.where(pred_c == m, idx, C), axis=0, keepdims=True)
            if needs_mask:
                arg = jnp.where(valid, arg, C)
            pred_oh = idx == arg                                 # (C, chunk)
        else:
            # optional fast path: marks every tied maximum (ties are
            # measure-zero for float logits but differs from torch on them)
            pred_oh = pred_c == m
            if needs_mask:
                pred_oh = jnp.logical_and(pred_oh, valid)
        gt_oh = idx == gt_c        # labels outside [0, C) silently contribute 0
        union = jnp.logical_or(pred_oh, gt_oh)                   # (C, chunk)

        # Lane fold on the otherwise-idle MXU: every result lane holds this
        # chunk's per-class count; 0/1 bf16 products accumulated in f32 = exact.
        return acc + jnp.dot(union.astype(jnp.bfloat16), ones_rhs,
                             preferred_element_type=jnp.float32)

    acc = jax.lax.fori_loop(0, n_chunks, body,
                            jnp.zeros((C, 128), jnp.float32),
                            unroll=min(2, n_chunks))
    out_ref[...] += acc[None, None]


def metric_sum_union(pred, gt, smooth=1e-10, hw_tile=32 * 1024,
                     exact_argmax=True):
    """pred: (N, C, H, W) logits (any float dtype); gt: (N, H, W) int labels.

    Returns (C,) float32: per-class union pixel count over the batch + smooth
    (== MetricSumUnion.forward).
    """
    N, C, H, W = pred.shape
    HW = H * W

    # Lane-aligned spatial tile: multiple of 128, capped at the image size and
    # at a VMEM budget (double-buffered pred + gt blocks <= ~12 MiB so the
    # default scoped-VMEM limit is respected on v5e/v6e/v7x).
    hw_ceil = pl.cdiv(HW, 128) * 128
    itemsize = pred.dtype.itemsize
    budget = (12 * 1024 * 1024) // (2 * (C * itemsize + 4))
    hw_tile = max(128, min((hw_tile // 128) * 128, (budget // 128) * 128, hw_ceil))
    num_t = pl.cdiv(HW, hw_tile)

    # Inner-loop chunk width (lane extent of in-kernel intermediates).
    chunk = 256 if hw_tile % 256 == 0 else 128

    # Second "parallel" axis: split the spatial tiles into G groups so both
    # v7x TensorCores are busy even at N == 1.  No-op on v5e / v6e.
    G = 2 if (num_t % 2 == 0 and num_t >= 2) else 1
    T_pg = num_t // G

    needs_mask = (HW % hw_tile) != 0

    pred_f = pred.reshape(N, C, HW)                 # native dtype, no HBM copy
    gt_f = gt.reshape(N, 1, HW).astype(jnp.int32)
    ones_rhs = jnp.ones((chunk, 128), jnp.bfloat16)

    kernel = functools.partial(
        _metric_sum_union_kernel, hw=HW, hw_tile=hw_tile, chunk=chunk,
        tiles_per_group=T_pg, needs_mask=needs_mask, exact_argmax=exact_argmax)

    out = pl.pallas_call(
        kernel,
        out_shape=jax.ShapeDtypeStruct((N, G, C, 128), jnp.float32),
        grid_spec=pltpu.PrefetchScalarGridSpec(
            num_scalar_prefetch=0,
            grid=(N, G, T_pg),
            in_specs=[
                pl.BlockSpec((1, C, hw_tile), lambda n, g, t: (n, 0, g * T_pg + t)),
                pl.BlockSpec((1, 1, hw_tile), lambda n, g, t: (n, 0, g * T_pg + t)),
                pl.BlockSpec((chunk, 128), lambda n, g, t: (0, 0)),
            ],
            out_specs=pl.BlockSpec((1, 1, C, 128), lambda n, g, t: (n, g, 0, 0)),
        ),
        compiler_params=pltpu.CompilerParams(
            # batch and spatial-group axes: independent partials -> megacore
            # parallel; tile axis: reduction into the resident output block.
            dimension_semantics=("parallel", "parallel", "arbitrary")),
    )(pred_f, gt_f, ones_rhs)

    # Epilogue in XLA: every lane of the 128-wide accumulator holds the same
    # per-(image, group, class) count, so read lane 0; sum the partials in
    # int32 (exact up to 2^31 total union pixels per class), add smooth in f32.
    counts = out[..., 0].astype(jnp.int32)                  # (N, G, C)
    total = jnp.sum(counts, axis=(0, 1)).astype(jnp.float32)
    return total + jnp.asarray(smooth, jnp.float32)


if __name__ == "__main__":
    key = jax.random.PRNGKey(0)
    k1, k2 = jax.random.split(key)
    N, C, H, W = 2, 4, 16, 16
    pred = jax.random.normal(k1, (N, C, H, W), dtype=jnp.float32)
    gt = jax.random.randint(k2, (N, H, W), 0, C, dtype=jnp.int32)

    out = metric_sum_union(pred, gt)
    jax.block_until_ready(out)

    # pure-JAX reference check
    arg = jnp.argmax(pred, axis=1)
    pred_oh = jax.nn.one_hot(arg, C, dtype=jnp.int32).astype(bool)
    gt_oh = jax.nn.one_hot(gt, C, dtype=jnp.int32).astype(bool)
    union = jnp.logical_or(pred_oh, gt_oh)
    ref = jnp.sum(union, axis=(0, 1, 2)).astype(jnp.float32) + jnp.float32(1e-10)
    assert out.shape == (C,) and jnp.allclose(out, ref), (out, ref)

    print("KERNEL_OK")
</pallas_src>

<mosaic_0001>
module attributes {stable_mosaic.version = 11 : i64} {
  func.func @_metric_sum_union_kernel(%arg0: i32, %arg1: i32, %arg2: i32, %arg3: memref<1x4x256xf32, #tpu.memory_space<vmem>>, %arg4: memref<1x1x256xi32, #tpu.memory_space<vmem>>, %arg5: memref<256x128xbf16, #tpu.memory_space<vmem>>, %arg6: memref<1x1x4x128xf32, #tpu.memory_space<vmem>>) attributes {dimension_semantics = [#tpu.dimension_semantics<parallel>, #tpu.dimension_semantics<parallel>, #tpu.dimension_semantics<arbitrary>], iteration_bounds = array<i64: 2, 1, 1>, scalar_prefetch = 0 : i64, scratch_operands = 0 : i64, tpu.core_type = #tpu.core_type<tc>, window_params = [{transform_indices = @transform_0, window_bounds = array<i64: 1, 4, 256>}, {transform_indices = @transform_1, window_bounds = array<i64: 1, 1, 256>}, {pipeline_mode = #tpu.pipeline_mode<synchronous>, transform_indices = @transform_2, window_bounds = array<i64: 256, 128>}, {transform_indices = @transform_3, window_bounds = array<i64: 1, 1, 4, 128>}]} {
    %c0_i32 = arith.constant 0 : i32
    %0 = arith.cmpi eq, %arg2, %c0_i32 : i32
    %1 = arith.extui %0 : i1 to i32
    %c0_i32_0 = arith.constant 0 : i32
    %2 = arith.cmpi ne, %1, %c0_i32_0 : i32
    scf.if %2 {
      %cst_18 = arith.constant 0.000000e+00 : f32
      %36 = vector.broadcast %cst_18 : f32 to vector<1x1x4x128xf32>
      %c0_19 = arith.constant 0 : index
      %c0_20 = arith.constant 0 : index
      %c0_21 = arith.constant 0 : index
      %c0_22 = arith.constant 0 : index
      %37 = vector.load %arg6[%c0_19, %c0_20, %c0_21, %c0_22] : memref<1x1x4x128xf32, #tpu.memory_space<vmem>>, vector<1x1x4x128xf32>
      tpu.vector_store %arg6[%c0_19, %c0_20, %c0_21, %c0_22], %36 {strides = array<i32>} : memref<1x1x4x128xf32, #tpu.memory_space<vmem>>, vector<1x1x4x128xf32>,
    } else {
    }
    %c0 = arith.constant 0 : index
    %c0_1 = arith.constant 0 : index
    %3 = vector.load %arg5[%c0, %c0_1] : memref<256x128xbf16, #tpu.memory_space<vmem>>, vector<256x128xbf16>
    %cst = arith.constant 0.000000e+00 : f32
    %4 = vector.broadcast %cst : f32 to vector<4x128xf32>
    %c0_i32_2 = arith.constant 0 : i32
    %c256_i32 = arith.constant 256 : i32
    %5 = arith.muli %c0_i32_2, %c256_i32 : i32
    %6 = tpu.assume_multiple %5, 256 : i32
    %c0_3 = arith.constant 0 : index
    %c0_4 = arith.constant 0 : index
    %7 = arith.index_cast %6 : i32 to index
    %8 = vector.load %arg3[%c0_3, %c0_4, %7] : memref<1x4x256xf32, #tpu.memory_space<vmem>>, vector<1x4x256xf32>
    %9 = vector.shape_cast %8 : vector<1x4x256xf32> to vector<4x256xf32>
    %c0_5 = arith.constant 0 : index
    %c0_6 = arith.constant 0 : index
    %10 = arith.index_cast %6 : i32 to index
    %11 = vector.load %arg4[%c0_5, %c0_6, %10] : memref<1x1x256xi32, #tpu.memory_space<vmem>>, vector<1x1x256xi32>
    %12 = vector.shape_cast %11 : vector<1x1x256xi32> to vector<1x256xi32>
    %13 = tpu.iota {dimensions = array<i32: 0>} : vector<4x256xi32>
    %cst_7 = arith.constant dense<0xFF800000> : vector<256xf32>
    %14 = vector.multi_reduction <maximumf>, %9, %cst_7 [0] : vector<4x256xf32> to vector<256xf32>
    %15 = vector.shape_cast %14 : vector<256xf32> to vector<1x256xf32>
    %16 = vector.broadcast %15 : vector<1x256xf32> to vector<4x256xf32>
    %17 = arith.cmpf oeq, %9, %16 : vector<4x256xf32>
    %c4_i32 = arith.constant 4 : i32
    %18 = vector.broadcast %c4_i32 : i32 to vector<4x256xi32>
    %19 = arith.select %17, %13, %18 : vector<4x256xi1>, vector<4x256xi32>
    %cst_8 = arith.constant dense<2147483647> : vector<256xi32>
    %20 = vector.multi_reduction <minsi>, %19, %cst_8 [0] : vector<4x256xi32> to vector<256xi32>
    %21 = vector.shape_cast %20 : vector<256xi32> to vector<1x256xi32>
    %22 = vector.broadcast %21 : vector<1x256xi32> to vector<4x256xi32>
    %23 = arith.cmpi eq, %13, %22 : vector<4x256xi32>
    %24 = vector.broadcast %12 : vector<1x256xi32> to vector<4x256xi32>
    %25 = arith.cmpi eq, %13, %24 : vector<4x256xi32>
    %26 = arith.ori %23, %25 : vector<4x256xi1>
    %27 = arith.extui %26 : vector<4x256xi1> to vector<4x256xi32>
    %28 = arith.sitofp %27 : vector<4x256xi32> to vector<4x256xf32>
    %29 = arith.truncf %28 : vector<4x256xf32> to vector<4x256xbf16>
    %cst_9 = arith.constant dense<0.000000e+00> : vector<4x128xf32>
    %30 = tpu.matmul %29, %3, %cst_9 {dimension_numbers = #tpu.dot_dimension_numbers<[1], [0], [0], [1], [0, 0, 1, 1], [], []>} : vector<4x256xbf16>, vector<256x128xbf16>, vector<4x128xf32> -> vector<4x128xf32>
    %31 = arith.addf %4, %30 : vector<4x128xf32>
    %c1_i32 = arith.constant 1 : i32
    %c0_10 = arith.constant 0 : index
    %c0_11 = arith.constant 0 : index
    %c0_12 = arith.constant 0 : index
    %c0_13 = arith.constant 0 : index
    %32 = vector.load %arg6[%c0_10, %c0_11, %c0_12, %c0_13] : memref<1x1x4x128xf32, #tpu.memory_space<vmem>>, vector<1x1x4x128xf32>
    %33 = vector.shape_cast %31 : vector<4x128xf32> to vector<1x1x4x128xf32>
    %34 = arith.addf %32, %33 : vector<1x1x4x128xf32>
    %c0_14 = arith.constant 0 : index
    %c0_15 = arith.constant 0 : index
    %c0_16 = arith.constant 0 : index
    %c0_17 = arith.constant 0 : index
    %35 = vector.load %arg6[%c0_14, %c0_15, %c0_16, %c0_17] : memref<1x1x4x128xf32, #tpu.memory_space<vmem>>, vector<1x1x4x128xf32>
    tpu.vector_store %arg6[%c0_14, %c0_15, %c0_16, %c0_17], %34 {strides = array<i32>} : memref<1x1x4x128xf32, #tpu.memory_space<vmem>>, vector<1x1x4x128xf32>,
    return
  }
  func.func @transform_0(%arg0: i32, %arg1: i32, %arg2: i32) -> (i32, i32, i32) {
    %c1_i32 = arith.constant 1 : i32
    %0 = arith.muli %arg1, %c1_i32 : i32
    %1 = arith.addi %0, %arg2 : i32
    %c0_i32 = arith.constant 0 : i32
    %c0_i32_0 = arith.constant 0 : i32
    return %arg0, %c0_i32, %1 : i32, i32, i32
  }
  func.func @transform_1(%arg0: i32, %arg1: i32, %arg2: i32) -> (i32, i32, i32) {
    %c1_i32 = arith.constant 1 : i32
    %0 = arith.muli %arg1, %c1_i32 : i32
    %1 = arith.addi %0, %arg2 : i32
    %c0_i32 = arith.constant 0 : i32
    %c0_i32_0 = arith.constant 0 : i32
    return %arg0, %c0_i32, %1 : i32, i32, i32
  }
  func.func @transform_2(%arg0: i32, %arg1: i32, %arg2: i32) -> (i32, i32) {
    %c0_i32 = arith.constant 0 : i32
    %c0_i32_0 = arith.constant 0 : i32
    %c0_i32_1 = arith.constant 0 : i32
    return %c0_i32, %c0_i32_0 : i32, i32
  }
  func.func @transform_3(%arg0: i32, %arg1: i32, %arg2: i32) -> (i32, i32, i32, i32) {
    %c0_i32 = arith.constant 0 : i32
    %c0_i32_0 = arith.constant 0 : i32
    %c0_i32_1 = arith.constant 0 : i32
    return %arg0, %arg1, %c0_i32, %c0_i32_0 : i32, i32, i32, i32
  }
}

</mosaic_0001>

<llo_original>
// kernel: tpu_custom_call.1
$region0: #{tpu_custom_call.1}
  #allocation0 [shape = 'u32[]', space=smem, size = 0x4, offset = 0x4, fixed_abs, tag = 'smem constant byte address 0x4 - core index']
  #allocation1 [shape = 'u32[144,128]{1,0:T(1,128)}', space=vmem, size = 0x12000, scoped, tag = 'internal scratch']
  %s0 = inlined_call_operand.hbm [shape: f32[2,4,256], index: 0, kind: input, shape index: {}]
  %s1 = inlined_call_operand.hbm [shape: s32[2,1,256], index: 1, kind: input, shape index: {}]
  %s2 = inlined_call_operand.hbm [shape: bf16[256,128], index: 2, kind: input, shape index: {}]
  %s3 = inlined_call_operand.hbm [shape: f32[2,1,4,128], index: 3, kind: output, shape index: {}]
  %s4 = sld [smem:[#allocation0]]
  $region61: #{tpu_custom_call.1} parent=0
    _
  %s6 = ssub.s32 1, %s4
  %s7 = scalar_select 0, %s6, %s4
  $region1: #{tpu_custom_call.1} parent=0
    #allocation2 [shape = 'u8[8192]{0}', space=vmem, size = 0x2000, scoped, tag = 'input window, operand 0']
    #allocation3 [shape = 's32[2]{0}', space=sflag, size = 0x8, scoped, tag = 'scoped memory for tpu_custom_call.1']
    #allocation4 [shape = 's32[2]{0}', space=sflag, size = 0x8, scoped, tag = 'scoped memory for tpu_custom_call.1']
    #allocation5 [shape = 'u8[2048]{0}', space=vmem, size = 0x800, scoped, tag = 'input window, operand 1']
    #allocation6 [shape = 's32[2]{0}', space=sflag, size = 0x8, scoped, tag = 'scoped memory for tpu_custom_call.1']
    #allocation7 [shape = 'u8[65536]{0}', space=vmem, size = 0x10000, scoped, tag = 'input window, operand 2, single buffered']
    #allocation8 [shape = 'u8[4096]{0}', space=vmem, size = 0x1000, scoped, tag = 'output window, operand 0']
    %8 = vsyncpa [#allocation3], 0
    %s9 = scalar_lea.sflag [#allocation3], 1
    %10 = vsyncpa %s9, 0
    %11 = vsyncpa [#allocation6], 0
    %s12 = scalar_lea.sflag [#allocation6], 1
    %13 = vsyncpa %s12, 0
    %14 = vsyncpa [#allocation4], 0
    %s15 = scalar_lea.sflag [#allocation4], 1
    %16 = vsyncpa %s15, 0
    loop: start=0, step=1, limit=4
    $region2: #{tpu_custom_call.1} parent=1 // loop_pre_header
      _
    $region3: #{tpu_custom_call.1} parent=1 // loop_header
      %s18 = sphi 0, %s22
      %p19 = scmp.ge.s32.totalorder %s18, 4
      %s25 = sphi 0, %s44
      %s26 = sphi 0, %s40
      %s27 = sphi 0, %s36
      %s28 = sphi 0, %s25
      %s29 = sphi 0, %s26
      %s30 = sphi 0, %s27
      %s31 = sphi 0, %s28
      %s32 = sphi 0, %s29
      %s33 = sphi 0, %s30
      %s51 = sphi 0, %s53
      %s54 = sphi 0, %s51
      %s55 = sphi 0, %s54
      %s71 = sphi 0, %s55
      %s81 = sphi 0, %s83
      %s84 = sphi 0, %s81
      %s85 = sphi 0, %s84
      %s101 = sphi 0, %s85
      %s105 = sphi 0, %s105
      %s107 = sphi 0, %s105
      %s108 = sphi 0, %s107
      %s122 = sphi 0, %s108
      %s130 = sphi 0, %s132
      %s133 = sphi 0, %s130
      %s134 = sphi 0, %s133
      %s150 = sphi 0, %s134
    $region4: #{tpu_custom_call.1} parent=1 // loop_header_branch
      %21 = sbr.rel (%p19) target = $region8
    $region5: #{tpu_custom_call.1} parent=1 // loop_body
      %s23 = ssub.s32 %s18, 1
      %s24 = ssub.s32 %s18, 2
      %s34 = sadd.s32 1, %s27
      %p35 = scmp.ge.s32.totalorder %s34, 1
      %s36 = scalar_select %p35, 0, %s34
      %s37 = sadd.s32 1, %s26
      %s38 = scalar_select %p35, %s37, %s26
      %p39 = scmp.ge.s32.totalorder %s38, 1
      %s40 = scalar_select %p39, 0, %s38
      %s41 = sadd.s32 1, %s25
      %s42 = scalar_select %p39, %s41, %s25
      %p43 = scmp.ge.s32.totalorder %s42, 2
      %s44 = scalar_select %p43, 0, %s42
      %s45 = sadd.s32 %s26, %s27
      %s46 = sadd.s32 %s40, %s36
      %s47 = ssub.s32 %s25, %s44
      %s48 = ssub.s32 %s45, %s46
      %s49 = sor.u32 %s47, %s48
      %p50 = scmp.eq.s32.totalorder %s49, 0
      %s52 = sadd.s32 %s51, 1
      %s53 = scalar_select %p50, %s51, %s52
      %p56 = pneg %p50
      %p57 = scmp.eq.s32.totalorder %s18, 1
      %p58 = por %p56, %p57
      %p59 = scmp.ne.s32.totalorder %s51, %s54
      %p60 = scmp.eq.s32.totalorder %s18, 0
      %p61 = por %p59, %p60
      %p62 = scmp.ne.s32.totalorder %s51, %s54
      %p63 = scmp.eq.s32.totalorder %s23, 1
      %p64 = por %p62, %p63
      %p65 = scmp.ne.s32.totalorder %s54, %s55
      %p66 = scmp.eq.s32.totalorder %s23, 0
      %p67 = por %p65, %p66
      %p68 = scmp.ne.s32.totalorder %s54, %s55
      %p69 = scmp.eq.s32.totalorder %s24, 1
      %p70 = por %p68, %p69
      %p72 = scmp.ne.s32.totalorder %s55, %s71
      %p73 = scmp.eq.s32.totalorder %s24, 0
      %p74 = por %p72, %p73
      %s75 = sadd.s32 %s26, %s27
      %s76 = sadd.s32 %s40, %s36
      %s77 = ssub.s32 %s25, %s44
      %s78 = ssub.s32 %s75, %s76
      %s79 = sor.u32 %s77, %s78
      %p80 = scmp.eq.s32.totalorder %s79, 0
      %s82 = sadd.s32 %s81, 1
      %s83 = scalar_select %p80, %s81, %s82
      %p86 = pneg %p80
      %p87 = scmp.eq.s32.totalorder %s18, 1
      %p88 = por %p86, %p87
      %p89 = scmp.ne.s32.totalorder %s81, %s84
      %p90 = scmp.eq.s32.totalorder %s18, 0
      %p91 = por %p89, %p90
      %p92 = scmp.ne.s32.totalorder %s81, %s84
      %p93 = scmp.eq.s32.totalorder %s23, 1
      %p94 = por %p92, %p93
      %p95 = scmp.ne.s32.totalorder %s84, %s85
      %p96 = scmp.eq.s32.totalorder %s23, 0
      %p97 = por %p95, %p96
      %p98 = scmp.ne.s32.totalorder %s84, %s85
      %p99 = scmp.eq.s32.totalorder %s24, 1
      %p100 = por %p98, %p99
      %p102 = scmp.ne.s32.totalorder %s85, %s101
      %p103 = scmp.eq.s32.totalorder %s24, 0
      %p104 = por %p102, %p103
      %s106 = sadd.s32 %s105, 1
      %p109 = scmp.eq.s32.totalorder %s18, 1
      %p110 = scmp.ne.s32.totalorder %s105, %s107
      %p111 = scmp.eq.s32.totalorder %s18, 0
      %p112 = por %p110, %p111
      %p113 = scmp.ne.s32.totalorder %s105, %s107
      %p114 = scmp.eq.s32.totalorder %s23, 1
      %p115 = por %p113, %p114
      %p116 = scmp.ne.s32.totalorder %s107, %s108
      %p117 = scmp.eq.s32.totalorder %s23, 0
      %p118 = por %p116, %p117
      %p119 = scmp.ne.s32.totalorder %s107, %s108
      %p120 = scmp.eq.s32.totalorder %s24, 1
      %p121 = por %p119, %p120
      %p123 = scmp.ne.s32.totalorder %s108, %s122
      %p124 = scmp.eq.s32.totalorder %s24, 0
      %p125 = por %p123, %p124
      %s126 = ssub.s32 %s25, %s44
      %s127 = ssub.s32 %s26, %s40
      %s128 = sor.u32 %s126, %s127
      %p129 = scmp.eq.s32.totalorder %s128, 0
      %s131 = sadd.s32 %s130, 1
      %s132 = scalar_select %p129, %s130, %s131
      %p135 = pneg %p129
      %p136 = scmp.eq.s32.totalorder %s18, 1
      %p137 = por %p135, %p136
      %p138 = scmp.ne.s32.totalorder %s130, %s133
      %p139 = scmp.eq.s32.totalorder %s18, 0
      %p140 = por %p138, %p139
      %p141 = scmp.ne.s32.totalorder %s130, %s133
      %p142 = scmp.eq.s32.totalorder %s23, 1
      %p143 = por %p141, %p142
      %p144 = scmp.ne.s32.totalorder %s133, %s134
      %p145 = scmp.eq.s32.totalorder %s23, 0
      %p146 = por %p144, %p145
      %p147 = scmp.ne.s32.totalorder %s133, %s134
      %p148 = scmp.eq.s32.totalorder %s24, 1
      %p149 = por %p147, %p148
      %p151 = scmp.ne.s32.totalorder %s134, %s150
      %p152 = scmp.eq.s32.totalorder %s24, 0
      %p153 = por %p151, %p152
      %p154 = scmp.le.s32.totalorder 1, %s18
      %p155 = scmp.lt.s32.totalorder %s18, 3
      %p156 = pnand %p154, %p155
      %p157 = pneg %p156
      // Predicated region
      $region9: #{tpu_custom_call.1} parent=5 // pred_check
        _
      $region10: #{tpu_custom_call.1} parent=5 // pred_check_branch
        %159 = sbr.rel (%p156) target = $region12
      $region11: #{tpu_custom_call.1} parent=5 // pred_region
        %s160 = ssub.s32 %s18, 1
        // Predicated region
        $region13: #{tpu_custom_call.1} parent=11 // pred_check
          %p161 = pneg %p118
        $region14: #{tpu_custom_call.1} parent=11 // pred_check_branch
          %163 = sbr.rel (%p161) target = $region16
        $region15: #{tpu_custom_call.1} parent=11 // pred_region
          %s165 = ssub.s32 2048, 2048
          %166 = vsyncadd [#allocation6], %s165
          %s167 = sshll.u32 [#allocation7], 4
          %s168 = int_to_ptr.vmem [resolvable:$true] %s167
          %173 = dma.hbm_to_vmem [thread:$0]  %s2, 2048, %s168, [#allocation6], 64, 64, 4
        $region16: #{tpu_custom_call.1} parent=11 // pred_fallthru
          _
      $region12: #{tpu_custom_call.1} parent=5 // pred_fallthru
        _
      %p174 = scmp.lt.s32.totalorder %s18, 2
      // Predicated region
      $region17: #{tpu_custom_call.1} parent=5 // pred_check
        %p175 = pneg %p174
      $region18: #{tpu_custom_call.1} parent=5 // pred_check_branch
        %177 = sbr.rel (%p175) target = $region20
      $region19: #{tpu_custom_call.1} parent=5 // pred_region
        // Predicated region
        $region21: #{tpu_custom_call.1} parent=19 // pred_check
          %p178 = pneg %p61
        $region22: #{tpu_custom_call.1} parent=19 // pred_check_branch
          %180 = sbr.rel (%p178) target = $region24
        $region23: #{tpu_custom_call.1} parent=19 // pred_region
          %s181 = sand.u32 %s51, 1
          %s182 = scalar_lea.sflag [#allocation3], %s181
          %s183 = sand.u32 %s51, 1
          %s184 = smul.addr %s183, 8
          %s185 = scalar_lea.vmem [#allocation2], %s184
          %s186 = sadd.s32 %s26, %s27
          %s187 = smul.u32 2, %s186
          %s189 = ssub.s32 128, 128
          %190 = vsyncadd %s182, %s189
          %s191 = smul.addr %s25, 2
          %s192 = sadd.s32 %s187, %s191
          %s193 = smul.addr %s192, 64
          %s194 = scalar_lea.hbm %s0, %s193
          %s196 = sshll.u32 %s185, 4
          %s197 = int_to_ptr.vmem [resolvable:$true] %s196
          %199 = dma.hbm_to_vmem [thread:$0]  %s194, 128, %s197, %s182
        $region24: #{tpu_custom_call.1} parent=19 // pred_fallthru
          _
        // Predicated region
        $region25: #{tpu_custom_call.1} parent=19 // pred_check
          %p200 = pneg %p91
        $region26: #{tpu_custom_call.1} parent=19 // pred_check_branch
          %202 = sbr.rel (%p200) target = $region28
        $region27: #{tpu_custom_call.1} parent=19 // pred_region
          %s203 = sand.u32 %s18, 1
          %s204 = scalar_lea.sflag [#allocation6], %s203
          %s205 = sand.u32 %s81, 1
          %s206 = smul.addr %s205, 2
          %s207 = scalar_lea.vmem [#allocation5], %s206
          %s208 = sadd.s32 %s26, %s27
          %s209 = smul.u32 2, %s208
          %s211 = ssub.s32 32, 32
          %212 = vsyncadd %s204, %s211
          %s213 = smul.addr %s25, 2
          %s214 = sadd.s32 %s209, %s213
          %s215 = smul.addr %s214, 16
          %s216 = scalar_lea.hbm %s1, %s215
          %s218 = sshll.u32 %s207, 4
          %s219 = int_to_ptr.vmem [resolvable:$true] %s218
          %221 = dma.hbm_to_vmem [thread:$0]  %s216, 32, %s219, %s204
        $region28: #{tpu_custom_call.1} parent=19 // pred_fallthru
          _
      $region20: #{tpu_custom_call.1} parent=5 // pred_fallthru
        _
      %p222 = scmp.le.s32.totalorder 1, %s18
      %p223 = scmp.lt.s32.totalorder %s18, 3
      %p224 = pnand %p222, %p223
      %p225 = pneg %p224
      // Predicated region
      $region29: #{tpu_custom_call.1} parent=5 // pred_check
        _
      $region30: #{tpu_custom_call.1} parent=5 // pred_check_branch
        %227 = sbr.rel (%p224) target = $region32
      $region31: #{tpu_custom_call.1} parent=5 // pred_region
        %s228 = ssub.s32 %s18, 1
        %s229 = sand.u32 %s54, 1
        %s230 = scalar_lea.sflag [#allocation3], %s229
        %s231 = sand.u32 %s54, 1
        %s232 = smul.addr %s231, 8
        %s233 = scalar_lea.vmem [#allocation2], %s232
        // Predicated region
        $region33: #{tpu_custom_call.1} parent=31 // pred_check
          %p234 = pneg %p67
        $region34: #{tpu_custom_call.1} parent=31 // pred_check_branch
          %236 = sbr.rel (%p234) target = $region36
        $region35: #{tpu_custom_call.1} parent=31 // pred_region
          %237 = dma.done %s230, 128
        $region36: #{tpu_custom_call.1} parent=31 // pred_fallthru
          _
        %s238 = sand.u32 %s23, 1
        %s239 = scalar_lea.sflag [#allocation6], %s238
        %s240 = sand.u32 %s84, 1
        %s241 = smul.addr %s240, 2
        %s242 = scalar_lea.vmem [#allocation5], %s241
        // Predicated region
        $region37: #{tpu_custom_call.1} parent=31 // pred_check
          %p243 = pneg %p97
        $region38: #{tpu_custom_call.1} parent=31 // pred_check_branch
          %245 = sbr.rel (%p243) target = $region40
        $region39: #{tpu_custom_call.1} parent=31 // pred_region
          %246 = dma.done %s239, 32
        $region40: #{tpu_custom_call.1} parent=31 // pred_fallthru
          _
        // Predicated region
        $region41: #{tpu_custom_call.1} parent=31 // pred_check
          %p247 = pneg %p118
        $region42: #{tpu_custom_call.1} parent=31 // pred_check_branch
          %249 = sbr.rel (%p247) target = $region44
        $region43: #{tpu_custom_call.1} parent=31 // pred_region
          %250 = dma.done [#allocation6], 2048
        $region44: #{tpu_custom_call.1} parent=31 // pred_fallthru
          _
        %s251 = sand.u32 %s54, 1
        %s252 = scalar_lea.sflag [#allocation3], %s251
        %s253 = sand.u32 %s54, 1
        %s254 = smul.addr %s253, 8
        %s255 = scalar_lea.vmem [#allocation2], %s254
        %p256 = pneg %p67
        %p257 = pneg %p64
        %s258 = sand.u32 %s23, 1
        %s259 = scalar_lea.sflag [#allocation6], %s258
        %s260 = sand.u32 %s84, 1
        %s261 = smul.addr %s260, 2
        %s262 = scalar_lea.vmem [#allocation5], %s261
        %p263 = pneg %p97
        %p264 = pneg %p94
        %p265 = pneg %p118
        %p266 = pneg %p115
        %p267 = pneg %p146
        %p268 = pneg %p143
        %s269 = sand.u32 %s133, 1
        %s270 = scalar_lea.sflag [#allocation4], %s269
        %s271 = sand.u32 %s133, 1
        %s272 = smul.addr %s271, 4
        %s273 = scalar_lea.vmem [#allocation8], %s272
        %s274 = sadd.s32 %s29, %s30
        %s275 = smul.u32 2, %s274
        %s276 = sadd.s32 %s29, %s30
        %s277 = smul.u32 2, %s276
        %p279 = scmp.eq.s32.totalorder %s30, 0
        // Predicated region
        $region45: #{tpu_custom_call.1} parent=31 // pred_check
          %p280 = pneg %p279
        $region46: #{tpu_custom_call.1} parent=31 // pred_check_branch
          %282 = sbr.rel (%p280) target = $region48
        $region47: #{tpu_custom_call.1} parent=31 // pred_region
          %283 = vst [vmem:[%s273] sm:$0xf] 0.0
        $region48: #{tpu_custom_call.1} parent=31 // pred_fallthru
          _
        %v284 = vld [vmem:[#allocation7] sm:$0xf]
        %v285 = vld [vmem:[#allocation7 + $0x4] sm:$0xf]
        %v286 = vld [vmem:[#allocation7 + $0x8] sm:$0xf]
        %v287 = vld [vmem:[#allocation7 + $0xc] sm:$0xf]
        %v288 = vld [vmem:[#allocation7 + $0x10] sm:$0xf]
        %v289 = vld [vmem:[#allocation7 + $0x14] sm:$0xf]
        %v290 = vld [vmem:[#allocation7 + $0x18] sm:$0xf]
        %v291 = vld [vmem:[#allocation7 + $0x1c] sm:$0xf]
        %v292 = vld [vmem:[#allocation7 + $0x20] sm:$0xf]
        %v293 = vld [vmem:[#allocation7 + $0x24] sm:$0xf]
        %v294 = vld [vmem:[#allocation7 + $0x28] sm:$0xf]
        %v295 = vld [vmem:[#allocation7 + $0x2c] sm:$0xf]
        %v296 = vld [vmem:[#allocation7 + $0x30] sm:$0xf]
        %v297 = vld [vmem:[#allocation7 + $0x34] sm:$0xf]
        %v298 = vld [vmem:[#allocation7 + $0x38] sm:$0xf]
        %v299 = vld [vmem:[#allocation7 + $0x3c] sm:$0xf]
        %v300 = vld [vmem:[#allocation7 + $0x40] sm:$0xf]
        %v301 = vld [vmem:[#allocation7 + $0x44] sm:$0xf]
        %v302 = vld [vmem:[#allocation7 + $0x48] sm:$0xf]
        %v303 = vld [vmem:[#allocation7 + $0x4c] sm:$0xf]
        %v304 = vld [vmem:[#allocation7 + $0x50] sm:$0xf]
        %v305 = vld [vmem:[#allocation7 + $0x54] sm:$0xf]
        %v306 = vld [vmem:[#allocation7 + $0x58] sm:$0xf]
        %v307 = vld [vmem:[#allocation7 + $0x5c] sm:$0xf]
        %v308 = vld [vmem:[#allocation7 + $0x60] sm:$0xf]
        %v309 = vld [vmem:[#allocation7 + $0x64] sm:$0xf]
        %v310 = vld [vmem:[#allocation7 + $0x68] sm:$0xf]
        %v311 = vld [vmem:[#allocation7 + $0x6c] sm:$0xf]
        %v312 = vld [vmem:[#allocation7 + $0x70] sm:$0xf]
        %v313 = vld [vmem:[#allocation7 + $0x74] sm:$0xf]
        %v314 = vld [vmem:[#allocation7 + $0x78] sm:$0xf]
        %v315 = vld [vmem:[#allocation7 + $0x7c] sm:$0xf]
        %v316 = vld [vmem:[%s233] sm:$0xff]
        %v317 = vld [vmem:[%s242] sm:$0x3]
        %v318 = vlaneseq
        %v319 = vshrl.u32 %v318, 7
        %v321 = vcombine.high %v316, %v316
        %vm323 = vcmask 1043456
        %v324 = vsel %vm323, %v316, -inf
        %v325 = vrot.slane %v324, 4
        %v326 = vmax.f32 %v324, %v325
        %v327 = vrot.slane %v326, 2
        %v328 = vmax.f32 %v326, %v327
        %v329 = vrot.slane %v328, 1
        %v330 = vmax.f32 %v328, %v329
        %v331 = vsel %vm323, %v321, -inf
        %v332 = vrot.slane %v331, 4
        %v333 = vmax.f32 %v331, %v332
        %v334 = vrot.slane %v333, 2
        %v335 = vmax.f32 %v333, %v334
        %v336 = vrot.slane %v335, 1
        %v337 = vmax.f32 %v335, %v336
        %v340 = vcombine.low %v330, %v337
        %vm342 = vcmp.eq.f32.partialorder %v316, %v340
        %v344 = vunpack.c.l.s4 839922192
        %v345 = vunpack.c.0.s8 %v344
        %v346 = vlaneseq
        %v347 = vshrl.u32 %v346, 7
        %v348 = vsub.s32 %v345, %v347
        %v349 = vrot.slane %v319, %v348
        %v350 = vsel %vm342, %v349, 4
        %v351 = vcombine.high %v350, %v350
        %v352 = vsel %vm323, %v350, 2147483647
        %v353 = vrot.slane %v352, 4
        %vm354 = vcmp.lt.s32.totalorder %v352, %v353
        %v355 = vsel %vm354, %v352, %v353
        %v356 = vrot.slane %v355, 2
        %vm357 = vcmp.lt.s32.totalorder %v355, %v356
        %v358 = vsel %vm357, %v355, %v356
        %v359 = vrot.slane %v358, 1
        %vm360 = vcmp.lt.s32.totalorder %v358, %v359
        %v361 = vsel %vm360, %v358, %v359
        %v362 = vsel %vm323, %v351, 2147483647
        %v363 = vrot.slane %v362, 4
        %vm364 = vcmp.lt.s32.totalorder %v362, %v363
        %v365 = vsel %vm364, %v362, %v363
        %v366 = vrot.slane %v365, 2
        %vm367 = vcmp.lt.s32.totalorder %v365, %v366
        %v368 = vsel %vm367, %v365, %v366
        %v369 = vrot.slane %v368, 1
        %vm370 = vcmp.lt.s32.totalorder %v368, %v369
        %v371 = vsel %vm370, %v368, %v369
        %vm372 = vcmp.eq.s32.totalorder %v319, %v361
        %vm373 = vcmp.eq.s32.totalorder %v319, %v371
        %v374 = vlaneseq
        %v375 = vshrl.u32 %v374, 7
        %v376 = vsub.s32 0, %v375
        %v377 = vrot.slane %v317, %v376
        %v378 = vlaneseq
        %v379 = vshrl.u32 %v378, 7
        %v380 = vsub.s32 1, %v379
        %v381 = vrot.slane %v317, %v380
        %vm382 = vcmp.eq.s32.totalorder %v319, %v377
        %vm383 = vcmp.eq.s32.totalorder %v319, %v381
        %vm384 = vmor %vm372, %vm382
        %vm385 = vmor %vm373, %vm383
        %v386 = vsel %vm384, 1, 0
        %v387 = vsel %vm385, 1, 0
        %v388 = vcvt.s32.f32 %v386
        %v389 = vcvt.s32.f32 %v387
        %v390 = vpack.c.bf16 %v388, %v388
        %v391 = vpack.c.bf16 %v389, %v389
        %v424 = vunpack.c.l.b16 %v284
        %v425 = vunpack.c.l.b16 %v285
        %v426 = vunpack.c.l.b16 %v286
        %v427 = vunpack.c.l.b16 %v287
        %v428 = vunpack.c.l.b16 %v288
        %v429 = vunpack.c.l.b16 %v289
        %v430 = vunpack.c.l.b16 %v290
        %v431 = vunpack.c.l.b16 %v291
        %v432 = vunpack.c.l.b16 %v292
        %v433 = vunpack.c.l.b16 %v293
        %v434 = vunpack.c.l.b16 %v294
        %v435 = vunpack.c.l.b16 %v295
        %v436 = vunpack.c.l.b16 %v296
        %v437 = vunpack.c.l.b16 %v297
        %v438 = vunpack.c.l.b16 %v298
        %v439 = vunpack.c.l.b16 %v299
        %v440 = vunpack.c.l.b16 %v300
        %v441 = vunpack.c.l.b16 %v301
        %v442 = vunpack.c.l.b16 %v302
        %v443 = vunpack.c.l.b16 %v303
        %v444 = vunpack.c.l.b16 %v304
        %v445 = vunpack.c.l.b16 %v305
        %v446 = vunpack.c.l.b16 %v306
        %v447 = vunpack.c.l.b16 %v307
        %v448 = vunpack.c.l.b16 %v308
        %v449 = vunpack.c.l.b16 %v309
        %v450 = vunpack.c.l.b16 %v310
        %v451 = vunpack.c.l.b16 %v311
        %v452 = vunpack.c.l.b16 %v312
        %v453 = vunpack.c.l.b16 %v313
        %v454 = vunpack.c.l.b16 %v314
        %v455 = vunpack.c.l.b16 %v315
        %v456 = vpack.c.b16 %v425, %v424
        %v457 = vpack.c.b16 %v427, %v426
        %v458 = vpack.c.b16 %v429, %v428
        %v459 = vpack.c.b16 %v431, %v430
        %v460 = vpack.c.b16 %v433, %v432
        %v461 = vpack.c.b16 %v435, %v434
        %v462 = vpack.c.b16 %v437, %v436
        %v463 = vpack.c.b16 %v439, %v438
        %v464 = vpack.c.b16 %v441, %v440
        %v465 = vpack.c.b16 %v443, %v442
        %v466 = vpack.c.b16 %v445, %v444
        %v467 = vpack.c.b16 %v447, %v446
        %v468 = vpack.c.b16 %v449, %v448
        %v469 = vpack.c.b16 %v451, %v450
        %v470 = vpack.c.b16 %v453, %v452
        %v471 = vpack.c.b16 %v455, %v454
        %488 = vmatprep.subr.bf16.mxu0 0
        %489 = vmatpush1.bf16.msra.mxu0 %v456
        %490 = vmatprep.subr.bf16.mxu0 0
        %491 = vmatpush1.bf16.msra.mxu0 %v457
        %492 = vmatprep.subr.bf16.mxu0 0
        %493 = vmatpush1.bf16.msra.mxu0 %v458
        %494 = vmatprep.subr.bf16.mxu0 0
        %495 = vmatpush1.bf16.msra.mxu0 %v459
        %496 = vmatprep.subr.bf16.mxu0 0
        %497 = vmatpush1.bf16.msra.mxu0 %v460
        %498 = vmatprep.subr.bf16.mxu0 0
        %499 = vmatpush1.bf16.msra.mxu0 %v461
        %500 = vmatprep.subr.bf16.mxu0 0
        %501 = vmatpush1.bf16.msra.mxu0 %v462
        %502 = vmatprep.subr.bf16.mxu0 0
        %503 = vmatpush1.bf16.msra.mxu0 %v463
        %504 = vmatprep.subr.bf16.mxu0 0
        %505 = vmatpush1.bf16.msra.mxu0 %v464
        %506 = vmatprep.subr.bf16.mxu0 0
        %507 = vmatpush1.bf16.msra.mxu0 %v465
        %508 = vmatprep.subr.bf16.mxu0 0
        %509 = vmatpush1.bf16.msra.mxu0 %v466
        %510 = vmatprep.subr.bf16.mxu0 0
        %511 = vmatpush1.bf16.msra.mxu0 %v467
        %512 = vmatprep.subr.bf16.mxu0 0
        %513 = vmatpush1.bf16.msra.mxu0 %v468
        %514 = vmatprep.subr.bf16.mxu0 0
        %515 = vmatpush1.bf16.msra.mxu0 %v469
        %516 = vmatprep.subr.bf16.mxu0 0
        %517 = vmatpush1.bf16.msra.mxu0 %v470
        %518 = vmatprep.subr.bf16.mxu0 0
        %519 = vmatpush1.bf16.msra.mxu0 %v471
        %520 = vmatprep.mubr.bf16.mxu0 %v391
        %521 = vmatmul.mubr.bf16.gmra.mrb[0].mxu0 %v390
        %v522 = vpop.f32.mrb[0].mxu0
        %v523 = vadd.f32 0.0, %v522
        %v524 = vpop.f32.mrb[0].mxu0
        %v525 = vpop.f32.mrb[0].mxu0
        %v526 = vpop.f32.mrb[0].mxu0
        %527 = vdwg.mxu0
        %v528 = vld [vmem:[%s273] sm:$0xf]
        %v529 = vadd.f32 %v528, %v523
        %530 = vst [vmem:[%s273] sm:$0xf] %v529
        %s531 = sand.u32 %s133, 1
        %s532 = scalar_lea.sflag [#allocation4], %s531
        %s533 = sand.u32 %s133, 1
        %s534 = smul.addr %s533, 4
        %s535 = scalar_lea.vmem [#allocation8], %s534
        // Predicated region
        $region49: #{tpu_custom_call.1} parent=31 // pred_check
          %p536 = pneg %p143
        $region50: #{tpu_custom_call.1} parent=31 // pred_check_branch
          %538 = sbr.rel (%p536) target = $region52
        $region51: #{tpu_custom_call.1} parent=31 // pred_region
          %s540 = ssub.s32 64, 64
          %541 = vsyncadd %s532, %s540
          %s542 = sadd.s32 %s29, %s28
          %s543 = smul.addr %s542, 64
          %s544 = scalar_lea.hbm %s3, %s543
          %s546 = sshll.u32 %s535, 4
          %s547 = int_to_ptr.vmem [resolvable:$true] %s546
          %549 = dma.vmem_to_hbm [thread:$0]  %s547, 64, %s544, %s532
        $region52: #{tpu_custom_call.1} parent=31 // pred_fallthru
          _
      $region32: #{tpu_custom_call.1} parent=5 // pred_fallthru
        _
      %p550 = scmp.le.s32.totalorder 2, %s18
      // Predicated region
      $region53: #{tpu_custom_call.1} parent=5 // pred_check
        %p551 = pneg %p550
      $region54: #{tpu_custom_call.1} parent=5 // pred_check_branch
        %553 = sbr.rel (%p551) target = $region56
      $region55: #{tpu_custom_call.1} parent=5 // pred_region
        %s554 = ssub.s32 %s18, 2
        // Predicated region
        $region57: #{tpu_custom_call.1} parent=55 // pred_check
          %p555 = pneg %p149
        $region58: #{tpu_custom_call.1} parent=55 // pred_check_branch
          %557 = sbr.rel (%p555) target = $region60
        $region59: #{tpu_custom_call.1} parent=55 // pred_region
          %s558 = sand.u32 %s134, 1
          %s559 = scalar_lea.sflag [#allocation4], %s558
          %s560 = sand.u32 %s134, 1
          %s561 = smul.addr %s560, 4
          %s562 = scalar_lea.vmem [#allocation8], %s561
          %563 = dma.done %s559, 64
        $region60: #{tpu_custom_call.1} parent=55 // pred_fallthru
          _
      $region56: #{tpu_custom_call.1} parent=5 // pred_fallthru
        _
    $region6: #{tpu_custom_call.1} parent=1 // loop_footer
      %s22 = sadd.s32 1, %s18
    $region7: #{tpu_custom_call.1} parent=1 // loop_footer_branch
      %17 = sbr.rel target = $region3
    $region8: #{tpu_custom_call.1} parent=1 // loop_exit
      _
    %564 = vsyncpa [#allocation3], 1
    %s565 = scalar_lea.sflag [#allocation3], 1
    %566 = vsyncpa %s565, 1
    %567 = vsyncpa [#allocation6], 1
    %s568 = scalar_lea.sflag [#allocation6], 1
    %569 = vsyncpa %s568, 1
    %570 = vsyncpa [#allocation4], 1
    %s571 = scalar_lea.sflag [#allocation4], 1
    %572 = vsyncpa %s571, 1

</llo_original>
